<compile_context>
chip_gen: v5e
topology: v5e:2x2
jax: 0.10.0
libtpu: 0.0.40
codegen_flags: <defaults>
</compile_context>

<pallas_src>
import jax
import jax.numpy as jnp
import numpy as np
from jax.experimental import pallas as pl
from jax.experimental.pallas import tpu as pltpu

HIDDEN = 768
NUM_ENT = 12
NUM_REL = 13


# --------------------------------------------------------------------------
# Pallas kernel: lane-dense pairwise relation-logit streamer.
#   relation_logits[b, r, i, j] = (x_i @ Wr1^T)[b, r, i] + (x_j @ Wr2^T + br)[b, r, j]
# which is exactly cat(x_i, x_j) @ Wr^T + br without materializing [S,S,2H].
# --------------------------------------------------------------------------
def _rel_pair_kernel(a_ref, b_ref, out_ref):
    # a_ref: [1, 13, TQ]  f32 query-side term   (x_i @ Wr1^T)
    # b_ref: [1, 13, TKV] f32 key-side term     (x_j @ Wr2^T + br)
    # out:   [1, 13, TQ, TKV]  (bf16 default), key axis on the 128-lane dim.
    a = a_ref[0]                                    # [13, TQ]
    b = b_ref[0]                                    # [13, TKV]
    out_ref[0] = (a[:, :, None] + b[:, None, :]).astype(out_ref.dtype)


def _vmem_budget():
    """(vmem_limit_bytes, usable block-set budget) for the current generation."""
    cap = 64 * 1024 * 1024  # conservative fallback = v7x per-TensorCore VMEM
    try:
        cap = int(getattr(pltpu.get_tpu_info(), "vmem_capacity_bytes", cap))
    except Exception:
        pass
    limit = min((cap * 3) // 4, 96 * 1024 * 1024)   # leave headroom for compiler
    budget = limit - 4 * 1024 * 1024                # margin for scratch/internal
    return limit, budget


def _pick_tiles(S, out_bytes, budget):
    """Largest (TQ, TKV) whose double-buffered block set fits the VMEM budget.

    Prefers a long key tile (contiguous, lane-dense HBM writeback), then the
    largest query tile.  Tiles are S or 128-multiples dividing S so all
    BlockSpecs satisfy the (8,128) constraint.
    """
    def block_set_bytes(tq, tkv):
        return 2 * (NUM_REL * tq * tkv * out_bytes     # output block (double-buffered)
                    + NUM_REL * tq * 4                 # a block
                    + NUM_REL * tkv * 4)               # b block

    if block_set_bytes(S, S) <= budget or S % 128 != 0:
        # Full-S blocks; also the only legal tiling when S isn't 128-aligned.
        # TODO(synk): pad S to a 128-multiple in the wrapper for huge unaligned S.
        return S, S
    cands = [S] + [t for t in (4096, 2048, 1024, 512, 256, 128) if t < S and S % t == 0]
    for tkv in cands:
        for tq in cands:
            if block_set_bytes(tq, tkv) <= budget:
                return tq, tkv
    return 128, 128


def unirel_heads(seq_out, ent_w, ent_b, rel_w, rel_b,
                 rel_dtype=jnp.bfloat16, rel_layout="bssr"):
    """seq_out: [B,S,H] f32.  ent_w:[12,H], ent_b:[12], rel_w:[13,2H], rel_b:[13].

    Returns (entity_logits [B,S,12] f32, relation_logits).
    rel_layout="bssr" (default): module layout [B,S,S,13] (transpose done on the
    narrow rel_dtype).  rel_layout="b13ss": lane-dense [B,13,S,S], no fixup
    transpose — preferred when the consumer is layout-agnostic.
    """
    B, S, H = seq_out.shape
    out_bytes = np.dtype(rel_dtype).itemsize
    vmem_limit, budget = _vmem_budget()
    TQ, TKV = _pick_tiles(S, out_bytes, budget)

    # Tiny projections stay in XLA (negligible FLOPs, poor MXU utilization
    # in-kernel); the Pallas kernel is a clean store-bound streamer.
    entity_logits = seq_out @ ent_w.T + ent_b                             # [B,S,12]
    a_t = jnp.einsum("bsh,rh->brs", seq_out, rel_w[:, :H])                # [B,13,S]
    b_t = jnp.einsum("bsh,rh->brs", seq_out, rel_w[:, H:]) \
        + rel_b[None, :, None]                                            # [B,13,S]

    grid_spec = pltpu.PrefetchScalarGridSpec(
        num_scalar_prefetch=0,
        grid=(B, S // TQ, S // TKV),
        in_specs=[
            pl.BlockSpec((1, NUM_REL, TQ), lambda b, q, k: (b, 0, q)),    # a
            pl.BlockSpec((1, NUM_REL, TKV), lambda b, q, k: (b, 0, k)),   # b
        ],
        out_specs=pl.BlockSpec((1, NUM_REL, TQ, TKV),
                               lambda b, q, k: (b, 0, q, k)),
    )

    rel_t = pl.pallas_call(
        _rel_pair_kernel,
        out_shape=jax.ShapeDtypeStruct((B, NUM_REL, S, S), rel_dtype),
        grid_spec=grid_spec,
        compiler_params=pltpu.CompilerParams(
            # all grid axes are independent -> both v7x TensorCores usable
            dimension_semantics=("parallel", "parallel", "parallel"),
            vmem_limit_bytes=vmem_limit,
        ),
    )(a_t, b_t)

    if rel_layout == "b13ss":
        return entity_logits, rel_t
    # Module layout [B,S,S,13]; the fixup transpose runs on the narrow dtype
    # (bf16 by default) so it costs half the HBM traffic it would at f32.
    return entity_logits, jnp.transpose(rel_t, (0, 2, 3, 1))


# --------------------------------------------------------------------------
# Deterministic stand-in BERT encoder (plain JAX glue).
# TODO(synk): pretrained bert-base-uncased weights cannot be loaded in-script;
# a deterministic 1-layer BERT-style encoder produces sequence_output [B,S,768].
# --------------------------------------------------------------------------
def _layer_norm(x, g, b, eps=1e-12):
    mu = x.mean(-1, keepdims=True)
    var = ((x - mu) ** 2).mean(-1, keepdims=True)
    return (x - mu) * jax.lax.rsqrt(var + eps) * g + b


def tiny_bert_encoder(p, input_ids, attention_mask):
    B, S = input_ids.shape
    H, n_heads = HIDDEN, 12
    dh = H // n_heads
    x = p["tok_emb"][input_ids] + p["pos_emb"][None, :S, :]
    x = _layer_norm(x, p["ln_emb_g"], p["ln_emb_b"])

    q = (x @ p["wq"] + p["bq"]).reshape(B, S, n_heads, dh)
    k = (x @ p["wk"] + p["bk"]).reshape(B, S, n_heads, dh)
    v = (x @ p["wv"] + p["bv"]).reshape(B, S, n_heads, dh)
    scores = jnp.einsum("bqhd,bkhd->bhqk", q, k) / jnp.sqrt(float(dh))
    mask = attention_mask[:, None, None, :] > 0
    scores = jnp.where(mask, scores, -1e9)
    probs = jax.nn.softmax(scores, axis=-1)
    attn = jnp.einsum("bhqk,bkhd->bqhd", probs, v).reshape(B, S, H)
    x = _layer_norm(x + attn @ p["wo"] + p["bo"], p["ln1_g"], p["ln1_b"])

    ffn = jax.nn.gelu(x @ p["w1"] + p["b1"]) @ p["w2"] + p["b2"]
    x = _layer_norm(x + ffn, p["ln2_g"], p["ln2_b"])
    return x


def init_params(key, vocab_size=1000, max_pos=64):
    H, FF = HIDDEN, 4 * HIDDEN
    ks = jax.random.split(key, 16)
    nrm = lambda k, shape, s=0.02: (s * jax.random.normal(k, shape)).astype(jnp.float32)
    p = {
        "tok_emb": nrm(ks[0], (vocab_size, H)),
        "pos_emb": nrm(ks[1], (max_pos, H)),
        "ln_emb_g": jnp.ones((H,), jnp.float32), "ln_emb_b": jnp.zeros((H,), jnp.float32),
        "wq": nrm(ks[2], (H, H)), "bq": jnp.zeros((H,), jnp.float32),
        "wk": nrm(ks[3], (H, H)), "bk": jnp.zeros((H,), jnp.float32),
        "wv": nrm(ks[4], (H, H)), "bv": jnp.zeros((H,), jnp.float32),
        "wo": nrm(ks[5], (H, H)), "bo": jnp.zeros((H,), jnp.float32),
        "ln1_g": jnp.ones((H,), jnp.float32), "ln1_b": jnp.zeros((H,), jnp.float32),
        "w1": nrm(ks[6], (H, FF)), "b1": jnp.zeros((FF,), jnp.float32),
        "w2": nrm(ks[7], (FF, H)), "b2": jnp.zeros((H,), jnp.float32),
        "ln2_g": jnp.ones((H,), jnp.float32), "ln2_b": jnp.zeros((H,), jnp.float32),
        # classifier heads (PyTorch nn.Linear layout: weight [out, in])
        "ent_w": nrm(ks[8], (NUM_ENT, H)),
        "ent_b": nrm(ks[9], (NUM_ENT,)),
        "rel_w": nrm(ks[10], (NUM_REL, 2 * H)),
        "rel_b": nrm(ks[11], (NUM_REL,)),
    }
    return p


# --------------------------------------------------------------------------
# Full forward (equivalent of UniRelModel.forward at inference).
# self_attention is declared in __init__ but never used in forward;
# dropout(p=0.1) is identity at inference; torch's autocast on the relation
# classifier makes bf16 relation logits semantically equivalent.
# --------------------------------------------------------------------------
@jax.jit
def unirel_forward(params, input_ids, attention_mask):
    seq_out = tiny_bert_encoder(params, input_ids, attention_mask)   # [B,S,768]
    entity_logits, relation_logits = unirel_heads(
        seq_out, params["ent_w"], params["ent_b"],
        params["rel_w"], params["rel_b"],
        rel_dtype=jnp.bfloat16,       # write-bound: halves HBM writeback bytes
        rel_layout="bssr")            # "b13ss" skips the fixup transpose entirely
    return {"entity_logits": entity_logits, "relation_logits": relation_logits}


# --------------------------------------------------------------------------
# Pure-JAX reference of the heads (mirrors the chunked torch loop exactly).
# --------------------------------------------------------------------------
def heads_reference(seq_out, ent_w, ent_b, rel_w, rel_b):
    B, S, H = seq_out.shape
    ent = seq_out @ ent_w.T + ent_b
    pairs = jnp.concatenate(
        [jnp.broadcast_to(seq_out[:, :, None, :], (B, S, S, H)),
         jnp.broadcast_to(seq_out[:, None, :, :], (B, S, S, H))], axis=-1)
    rel = pairs @ rel_w.T + rel_b
    return ent, rel


if __name__ == "__main__":
    key = jax.random.PRNGKey(0)
    B, S, VOCAB = 2, 16, 1000

    pkey, dkey1, dkey2 = jax.random.split(key, 3)
    params = init_params(pkey, vocab_size=VOCAB, max_pos=64)

    input_ids = jax.random.randint(dkey1, (B, S), 0, VOCAB, dtype=jnp.int32)
    attention_mask = jnp.concatenate(
        [jnp.ones((B, S - 3), jnp.int32), jnp.zeros((B, 3), jnp.int32)], axis=1)

    out = unirel_forward(params, input_ids, attention_mask)
    jax.block_until_ready(out)

    assert out["entity_logits"].shape == (B, S, NUM_ENT)
    assert out["relation_logits"].shape == (B, S, S, NUM_REL)

    # correctness check of the Pallas heads against a pure-JAX reference
    seq_out = tiny_bert_encoder(params, input_ids, attention_mask)
    ent_ref, rel_ref = heads_reference(
        seq_out, params["ent_w"], params["ent_b"], params["rel_w"], params["rel_b"])
    ent_got = np.asarray(jnp.asarray(out["entity_logits"], jnp.float32))
    rel_got = np.asarray(jnp.asarray(out["relation_logits"], jnp.float32))
    np.testing.assert_allclose(ent_got, np.asarray(ent_ref), rtol=2e-2, atol=2e-2)
    np.testing.assert_allclose(rel_got, np.asarray(rel_ref), rtol=2e-2, atol=2e-2)

    print("KERNEL_OK")
</pallas_src>

<mosaic_0001>
module attributes {stable_mosaic.version = 11 : i64} {
  func.func @_rel_pair_kernel(%arg0: i32, %arg1: i32, %arg2: i32, %arg3: memref<1x13x16xf32, #tpu.memory_space<vmem>>, %arg4: memref<1x13x16xf32, #tpu.memory_space<vmem>>, %arg5: memref<1x13x16x16xbf16, #tpu.memory_space<vmem>>) attributes {dimension_semantics = [#tpu.dimension_semantics<parallel>, #tpu.dimension_semantics<parallel>, #tpu.dimension_semantics<parallel>], iteration_bounds = array<i64: 2, 1, 1>, scalar_prefetch = 0 : i64, scratch_operands = 0 : i64, tpu.core_type = #tpu.core_type<tc>, window_params = [{transform_indices = @transform_0, window_bounds = array<i64: 1, 13, 16>}, {transform_indices = @transform_1, window_bounds = array<i64: 1, 13, 16>}, {transform_indices = @transform_2, window_bounds = array<i64: 1, 13, 16, 16>}]} {
    %c0 = arith.constant 0 : index
    %c0_0 = arith.constant 0 : index
    %c0_1 = arith.constant 0 : index
    %0 = vector.load %arg3[%c0, %c0_0, %c0_1] : memref<1x13x16xf32, #tpu.memory_space<vmem>>, vector<1x13x16xf32>
    %1 = vector.shape_cast %0 : vector<1x13x16xf32> to vector<13x16xf32>
    %c0_2 = arith.constant 0 : index
    %c0_3 = arith.constant 0 : index
    %c0_4 = arith.constant 0 : index
    %2 = vector.load %arg4[%c0_2, %c0_3, %c0_4] : memref<1x13x16xf32, #tpu.memory_space<vmem>>, vector<1x13x16xf32>
    %3 = vector.shape_cast %2 : vector<1x13x16xf32> to vector<13x16xf32>
    %4 = vector.shape_cast %1 : vector<13x16xf32> to vector<13x16x1xf32>
    %5 = vector.shape_cast %3 : vector<13x16xf32> to vector<13x1x16xf32>
    %6 = vector.broadcast %4 : vector<13x16x1xf32> to vector<13x16x16xf32>
    %7 = vector.broadcast %5 : vector<13x1x16xf32> to vector<13x16x16xf32>
    %8 = arith.addf %6, %7 : vector<13x16x16xf32>
    %9 = arith.truncf %8 : vector<13x16x16xf32> to vector<13x16x16xbf16>
    %c0_5 = arith.constant 0 : index
    %c0_6 = arith.constant 0 : index
    %c0_7 = arith.constant 0 : index
    %c0_8 = arith.constant 0 : index
    %10 = vector.load %arg5[%c0_5, %c0_6, %c0_7, %c0_8] : memref<1x13x16x16xbf16, #tpu.memory_space<vmem>>, vector<1x13x16x16xbf16>
    %11 = vector.shape_cast %10 : vector<1x13x16x16xbf16> to vector<13x16x16xbf16>
    %12 = vector.shape_cast %9 : vector<13x16x16xbf16> to vector<1x13x16x16xbf16>
    tpu.vector_store %arg5[%c0_5, %c0_6, %c0_7, %c0_8], %12 {strides = array<i32>} : memref<1x13x16x16xbf16, #tpu.memory_space<vmem>>, vector<1x13x16x16xbf16>,
    return
  }
  func.func @transform_0(%arg0: i32, %arg1: i32, %arg2: i32) -> (i32, i32, i32) {
    %c0_i32 = arith.constant 0 : i32
    %c0_i32_0 = arith.constant 0 : i32
    return %arg0, %c0_i32, %arg1 : i32, i32, i32
  }
  func.func @transform_1(%arg0: i32, %arg1: i32, %arg2: i32) -> (i32, i32, i32) {
    %c0_i32 = arith.constant 0 : i32
    %c0_i32_0 = arith.constant 0 : i32
    return %arg0, %c0_i32, %arg2 : i32, i32, i32
  }
  func.func @transform_2(%arg0: i32, %arg1: i32, %arg2: i32) -> (i32, i32, i32, i32) {
    %c0_i32 = arith.constant 0 : i32
    %c0_i32_0 = arith.constant 0 : i32
    return %arg0, %c0_i32, %arg1, %arg2 : i32, i32, i32, i32
  }
}

</mosaic_0001>

<llo_original>
// kernel: unirel_forward.1
$region0: #{unirel_forward.1}
  #allocation0 [shape = 'u32[]', space=smem, size = 0x4, offset = 0x4, fixed_abs, tag = 'smem constant byte address 0x4 - core index']
  #allocation1 [shape = 'u32[72,128]{1,0:T(1,128)}', space=vmem, size = 0x9000, scoped, tag = 'internal scratch']
  %s0 = inlined_call_operand.vmem [shape: f32[2,13,16], index: 0, kind: input, shape index: {}]
  %s1 = inlined_call_operand.vmem [shape: f32[2,13,16], index: 1, kind: input, shape index: {}]
  %s2 = inlined_call_operand.hbm [shape: bf16[2,13,16,16], index: 2, kind: output, shape index: {}]
  %s3 = sld [smem:[#allocation0]]
  $region41: #{unirel_forward.1} parent=0
    _
  %s5 = ssub.s32 1, %s3
  %s6 = scalar_select 0, %s5, %s3
  $region1: #{unirel_forward.1} parent=0
    #allocation2 [shape = 'u8[106496]{0}', space=vmem, size = 0x1a000, scoped, tag = 'output window, operand 0']
    #allocation3 [shape = 's32[2]{0}', space=sflag, size = 0x8, scoped, tag = 'scoped memory for unirel_forward.1']
    %7 = vsyncpa [#allocation3], 0
    %s8 = scalar_lea.sflag [#allocation3], 1
    %9 = vsyncpa %s8, 0
    loop: start=0, step=1, limit=4
    $region2: #{unirel_forward.1} parent=1 // loop_pre_header
      _
    $region3: #{unirel_forward.1} parent=1 // loop_header
      %s11 = sphi 0, %s15
      %p12 = scmp.ge.s32.totalorder %s11, 4
      %s18 = sphi 0, %s37
      %s19 = sphi 0, %s33
      %s20 = sphi 0, %s29
      %s21 = sphi 0, %s18
      %s22 = sphi 0, %s19
      %s23 = sphi 0, %s20
      %s24 = sphi 0, %s21
      %s25 = sphi 0, %s22
      %s26 = sphi 0, %s23
      %s42 = sphi 0, %s44
      %s45 = sphi 0, %s42
      %s46 = sphi 0, %s45
      %s62 = sphi 0, %s46
      %s70 = sphi 0, %s72
      %s73 = sphi 0, %s70
      %s74 = sphi 0, %s73
      %s90 = sphi 0, %s74
      %s100 = sphi 0, %s102
      %s103 = sphi 0, %s100
      %s104 = sphi 0, %s103
      %s120 = sphi 0, %s104
    $region4: #{unirel_forward.1} parent=1 // loop_header_branch
      %14 = sbr.rel (%p12) target = $region8
    $region5: #{unirel_forward.1} parent=1 // loop_body
      %s16 = ssub.s32 %s11, 1
      %s17 = ssub.s32 %s11, 2
      %s27 = sadd.s32 1, %s20
      %p28 = scmp.ge.s32.totalorder %s27, 1
      %s29 = scalar_select %p28, 0, %s27
      %s30 = sadd.s32 1, %s19
      %s31 = scalar_select %p28, %s30, %s19
      %p32 = scmp.ge.s32.totalorder %s31, 1
      %s33 = scalar_select %p32, 0, %s31
      %s34 = sadd.s32 1, %s18
      %s35 = scalar_select %p32, %s34, %s18
      %p36 = scmp.ge.s32.totalorder %s35, 2
      %s37 = scalar_select %p36, 0, %s35
      %s38 = ssub.s32 %s18, %s37
      %s39 = ssub.s32 %s19, %s33
      %s40 = sor.u32 %s38, %s39
      %p41 = scmp.eq.s32.totalorder %s40, 0
      %s43 = sadd.s32 %s42, 1
      %s44 = scalar_select %p41, %s42, %s43
      %p47 = pneg %p41
      %p48 = scmp.eq.s32.totalorder %s11, 1
      %p49 = por %p47, %p48
      %p50 = scmp.ne.s32.totalorder %s42, %s45
      %p51 = scmp.eq.s32.totalorder %s11, 0
      %p52 = por %p50, %p51
      %p53 = scmp.ne.s32.totalorder %s42, %s45
      %p54 = scmp.eq.s32.totalorder %s16, 1
      %p55 = por %p53, %p54
      %p56 = scmp.ne.s32.totalorder %s45, %s46
      %p57 = scmp.eq.s32.totalorder %s16, 0
      %p58 = por %p56, %p57
      %p59 = scmp.ne.s32.totalorder %s45, %s46
      %p60 = scmp.eq.s32.totalorder %s17, 1
      %p61 = por %p59, %p60
      %p63 = scmp.ne.s32.totalorder %s46, %s62
      %p64 = scmp.eq.s32.totalorder %s17, 0
      %p65 = por %p63, %p64
      %s66 = ssub.s32 %s18, %s37
      %s67 = ssub.s32 %s20, %s29
      %s68 = sor.u32 %s66, %s67
      %p69 = scmp.eq.s32.totalorder %s68, 0
      %s71 = sadd.s32 %s70, 1
      %s72 = scalar_select %p69, %s70, %s71
      %p75 = pneg %p69
      %p76 = scmp.eq.s32.totalorder %s11, 1
      %p77 = por %p75, %p76
      %p78 = scmp.ne.s32.totalorder %s70, %s73
      %p79 = scmp.eq.s32.totalorder %s11, 0
      %p80 = por %p78, %p79
      %p81 = scmp.ne.s32.totalorder %s70, %s73
      %p82 = scmp.eq.s32.totalorder %s16, 1
      %p83 = por %p81, %p82
      %p84 = scmp.ne.s32.totalorder %s73, %s74
      %p85 = scmp.eq.s32.totalorder %s16, 0
      %p86 = por %p84, %p85
      %p87 = scmp.ne.s32.totalorder %s73, %s74
      %p88 = scmp.eq.s32.totalorder %s17, 1
      %p89 = por %p87, %p88
      %p91 = scmp.ne.s32.totalorder %s74, %s90
      %p92 = scmp.eq.s32.totalorder %s17, 0
      %p93 = por %p91, %p92
      %s94 = ssub.s32 %s18, %s37
      %s95 = ssub.s32 %s19, %s33
      %s96 = sor.u32 %s94, %s95
      %s97 = ssub.s32 %s20, %s29
      %s98 = sor.u32 %s96, %s97
      %p99 = scmp.eq.s32.totalorder %s98, 0
      %s101 = sadd.s32 %s100, 1
      %s102 = scalar_select %p99, %s100, %s101
      %p105 = pneg %p99
      %p106 = scmp.eq.s32.totalorder %s11, 1
      %p107 = por %p105, %p106
      %p108 = scmp.ne.s32.totalorder %s100, %s103
      %p109 = scmp.eq.s32.totalorder %s11, 0
      %p110 = por %p108, %p109
      %p111 = scmp.ne.s32.totalorder %s100, %s103
      %p112 = scmp.eq.s32.totalorder %s16, 1
      %p113 = por %p111, %p112
      %p114 = scmp.ne.s32.totalorder %s103, %s104
      %p115 = scmp.eq.s32.totalorder %s16, 0
      %p116 = por %p114, %p115
      %p117 = scmp.ne.s32.totalorder %s103, %s104
      %p118 = scmp.eq.s32.totalorder %s17, 1
      %p119 = por %p117, %p118
      %p121 = scmp.ne.s32.totalorder %s104, %s120
      %p122 = scmp.eq.s32.totalorder %s17, 0
      %p123 = por %p121, %p122
      %p124 = scmp.le.s32.totalorder 1, %s11
      %p125 = scmp.lt.s32.totalorder %s11, 3
      %p126 = pnand %p124, %p125
      %p127 = pneg %p126
      // Predicated region
      $region9: #{unirel_forward.1} parent=5 // pred_check
        _
      $region10: #{unirel_forward.1} parent=5 // pred_check_branch
        %129 = sbr.rel (%p126) target = $region12
      $region11: #{unirel_forward.1} parent=5 // pred_region
        %s130 = ssub.s32 %s11, 1
      $region12: #{unirel_forward.1} parent=5 // pred_fallthru
        _
      %p131 = scmp.lt.s32.totalorder %s11, 2
      // Predicated region
      $region13: #{unirel_forward.1} parent=5 // pred_check
        %p132 = pneg %p131
      $region14: #{unirel_forward.1} parent=5 // pred_check_branch
        %134 = sbr.rel (%p132) target = $region16
      $region15: #{unirel_forward.1} parent=5 // pred_region
        // Predicated region
        $region17: #{unirel_forward.1} parent=15 // pred_check
          %p135 = pneg %p52
        $region18: #{unirel_forward.1} parent=15 // pred_check_branch
          %137 = sbr.rel (%p135) target = $region20
        $region19: #{unirel_forward.1} parent=15 // pred_region
          %p138 = scmp.lt.s32.totalorder %s18, 1
          %s139 = scalar_select %p138, %s18, 1
          %p140 = scmp.lt.s32.totalorder %s19, 0
          %s141 = scalar_select %p140, %s19, 0
          %s142 = smul.addr %s139, 2
          %s143 = sadd.s32 %s141, %s142
          %s144 = smul.addr %s143, 8
          %s145 = scalar_lea.vmem %s0, %s144
        $region20: #{unirel_forward.1} parent=15 // pred_fallthru
          _
        // Predicated region
        $region21: #{unirel_forward.1} parent=15 // pred_check
          %p146 = pneg %p80
        $region22: #{unirel_forward.1} parent=15 // pred_check_branch
          %148 = sbr.rel (%p146) target = $region24
        $region23: #{unirel_forward.1} parent=15 // pred_region
          %p149 = scmp.lt.s32.totalorder %s18, 1
          %s150 = scalar_select %p149, %s18, 1
          %p151 = scmp.lt.s32.totalorder %s20, 0
          %s152 = scalar_select %p151, %s20, 0
          %s153 = smul.addr %s150, 2
          %s154 = sadd.s32 %s152, %s153
          %s155 = smul.addr %s154, 8
          %s156 = scalar_lea.vmem %s1, %s155
        $region24: #{unirel_forward.1} parent=15 // pred_fallthru
          _
      $region16: #{unirel_forward.1} parent=5 // pred_fallthru
        _
      %p157 = scmp.le.s32.totalorder 1, %s11
      %p158 = scmp.lt.s32.totalorder %s11, 3
      %p159 = pnand %p157, %p158
      %p160 = pneg %p159
      // Predicated region
      $region25: #{unirel_forward.1} parent=5 // pred_check
        _
      $region26: #{unirel_forward.1} parent=5 // pred_check_branch
        %162 = sbr.rel (%p159) target = $region28
      $region27: #{unirel_forward.1} parent=5 // pred_region
        %s163 = ssub.s32 %s11, 1
        %p164 = scmp.lt.s32.totalorder %s21, 1
        %s165 = scalar_select %p164, %s21, 1
        %p166 = scmp.lt.s32.totalorder %s22, 0
        %s167 = scalar_select %p166, %s22, 0
        %s168 = smul.addr %s165, 2
        %s169 = sadd.s32 %s167, %s168
        %s170 = smul.addr %s169, 8
        %s171 = scalar_lea.vmem %s0, %s170
        %p172 = pneg %p58
        %p173 = pneg %p55
        %p174 = scmp.lt.s32.totalorder %s21, 1
        %s175 = scalar_select %p174, %s21, 1
        %p176 = scmp.lt.s32.totalorder %s23, 0
        %s177 = scalar_select %p176, %s23, 0
        %s178 = smul.addr %s175, 2
        %s179 = sadd.s32 %s177, %s178
        %s180 = smul.addr %s179, 8
        %s181 = scalar_lea.vmem %s1, %s180
        %p182 = pneg %p86
        %p183 = pneg %p83
        %p184 = pneg %p116
        %p185 = pneg %p113
        %s186 = sand.u32 %s103, 1
        %s187 = scalar_lea.sflag [#allocation3], %s186
        %s188 = sand.u32 %s103, 1
        %s189 = smul.addr %s188, 104
        %s190 = scalar_lea.vmem [#allocation2], %s189
        %p191 = scmp.lt.s32.totalorder %s21, 1
        %s192 = scalar_select %p191, %s21, 1
        %p193 = scmp.lt.s32.totalorder %s22, 0
        %s194 = scalar_select %p193, %s22, 0
        %s195 = smul.addr %s192, 2
        %s196 = sadd.s32 %s194, %s195
        %s197 = smul.addr %s196, 8
        %s198 = scalar_lea.vmem %s0, %s197
        %p199 = scmp.lt.s32.totalorder %s21, 1
        %s200 = scalar_select %p199, %s21, 1
        %p201 = scmp.lt.s32.totalorder %s23, 0
        %s202 = scalar_select %p201, %s23, 0
        %s203 = smul.addr %s200, 2
        %s204 = sadd.s32 %s202, %s203
        %s205 = smul.addr %s204, 8
        %s206 = scalar_lea.vmem %s1, %s205
        %s207 = smul.u32 2, %s22
        %v208 = vld [vmem:[%s198] sm:$0xff]
        %v209 = vld [vmem:[%s198 + $0x8] sm:$0x1f]
        %v210 = vld [vmem:[%s206] sm:$0xff]
        %v211 = vld [vmem:[%s206 + $0x8] sm:$0x1f]
        %v212 = vperm.slane %v208, 0
        %v213 = vlaneseq
        %v214 = vshrl.u32 %v213, 7
        %216 = vset.pattern.permute.xlu0 %v214
        %217 = vperm.xlu0 %216, %v212
        %v218 = vpop.permute.xlu0 %217
        %v219 = vlaneseq
        %v220 = vshrl.u32 %v219, 7
        %v221 = vadd.s32 %v220, 8
        %222 = vset.pattern.permute.xlu0 %v221
        %223 = vperm.xlu0 %222, %v212
        %v224 = vpop.permute.xlu0 %223
        %v225 = vperm.slane %v208, 1
        %v226 = vlaneseq
        %v227 = vshrl.u32 %v226, 7
        %229 = vset.pattern.permute.xlu0 %v227
        %230 = vperm.xlu0 %229, %v225
        %v231 = vpop.permute.xlu0 %230
        %v232 = vlaneseq
        %v233 = vshrl.u32 %v232, 7
        %v234 = vadd.s32 %v233, 8
        %235 = vset.pattern.permute.xlu0 %v234
        %236 = vperm.xlu0 %235, %v225
        %v237 = vpop.permute.xlu0 %236
        %v238 = vperm.slane %v208, 2
        %v239 = vlaneseq
        %v240 = vshrl.u32 %v239, 7
        %242 = vset.pattern.permute.xlu0 %v240
        %243 = vperm.xlu0 %242, %v238
        %v244 = vpop.permute.xlu0 %243
        %v245 = vlaneseq
        %v246 = vshrl.u32 %v245, 7
        %v247 = vadd.s32 %v246, 8
        %248 = vset.pattern.permute.xlu0 %v247
        %249 = vperm.xlu0 %248, %v238
        %v250 = vpop.permute.xlu0 %249
        %v251 = vperm.slane %v208, 3
        %v252 = vlaneseq
        %v253 = vshrl.u32 %v252, 7
        %255 = vset.pattern.permute.xlu0 %v253
        %256 = vperm.xlu0 %255, %v251
        %v257 = vpop.permute.xlu0 %256
        %v258 = vlaneseq
        %v259 = vshrl.u32 %v258, 7
        %v260 = vadd.s32 %v259, 8
        %261 = vset.pattern.permute.xlu0 %v260
        %262 = vperm.xlu0 %261, %v251
        %v263 = vpop.permute.xlu0 %262
        %v264 = vperm.slane %v208, 4
        %v265 = vlaneseq
        %v266 = vshrl.u32 %v265, 7
        %268 = vset.pattern.permute.xlu0 %v266
        %269 = vperm.xlu0 %268, %v264
        %v270 = vpop.permute.xlu0 %269
        %v271 = vlaneseq
        %v272 = vshrl.u32 %v271, 7
        %v273 = vadd.s32 %v272, 8
        %274 = vset.pattern.permute.xlu0 %v273
        %275 = vperm.xlu0 %274, %v264
        %v276 = vpop.permute.xlu0 %275
        %v277 = vperm.slane %v208, 5
        %v278 = vlaneseq
        %v279 = vshrl.u32 %v278, 7
        %281 = vset.pattern.permute.xlu0 %v279
        %282 = vperm.xlu0 %281, %v277
        %v283 = vpop.permute.xlu0 %282
        %v284 = vlaneseq
        %v285 = vshrl.u32 %v284, 7
        %v286 = vadd.s32 %v285, 8
        %287 = vset.pattern.permute.xlu0 %v286
        %288 = vperm.xlu0 %287, %v277
        %v289 = vpop.permute.xlu0 %288
        %v290 = vperm.slane %v208, 6
        %v291 = vlaneseq
        %v292 = vshrl.u32 %v291, 7
        %294 = vset.pattern.permute.xlu0 %v292
        %295 = vperm.xlu0 %294, %v290
        %v296 = vpop.permute.xlu0 %295
        %v297 = vlaneseq
        %v298 = vshrl.u32 %v297, 7
        %v299 = vadd.s32 %v298, 8
        %300 = vset.pattern.permute.xlu0 %v299
        %301 = vperm.xlu0 %300, %v290
        %v302 = vpop.permute.xlu0 %301
        %v303 = vperm.slane %v208, 7
        %v304 = vlaneseq
        %v305 = vshrl.u32 %v304, 7
        %307 = vset.pattern.permute.xlu0 %v305
        %308 = vperm.xlu0 %307, %v303
        %v309 = vpop.permute.xlu0 %308
        %v310 = vlaneseq
        %v311 = vshrl.u32 %v310, 7
        %v312 = vadd.s32 %v311, 8
        %313 = vset.pattern.permute.xlu0 %v312
        %314 = vperm.xlu0 %313, %v303
        %v315 = vpop.permute.xlu0 %314
        %v316 = vperm.slane %v209, 0
        %v317 = vlaneseq
        %v318 = vshrl.u32 %v317, 7
        %320 = vset.pattern.permute.xlu0 %v318
        %321 = vperm.xlu0 %320, %v316
        %v322 = vpop.permute.xlu0 %321
        %v323 = vlaneseq
        %v324 = vshrl.u32 %v323, 7
        %v325 = vadd.s32 %v324, 8
        %326 = vset.pattern.permute.xlu0 %v325
        %327 = vperm.xlu0 %326, %v316
        %v328 = vpop.permute.xlu0 %327
        %v329 = vperm.slane %v209, 1
        %v330 = vlaneseq
        %v331 = vshrl.u32 %v330, 7
        %333 = vset.pattern.permute.xlu0 %v331
        %334 = vperm.xlu0 %333, %v329
        %v335 = vpop.permute.xlu0 %334
        %v336 = vlaneseq
        %v337 = vshrl.u32 %v336, 7
        %v338 = vadd.s32 %v337, 8
        %339 = vset.pattern.permute.xlu0 %v338
        %340 = vperm.xlu0 %339, %v329
        %v341 = vpop.permute.xlu0 %340
        %v342 = vperm.slane %v209, 2
        %v343 = vlaneseq
        %v344 = vshrl.u32 %v343, 7
        %346 = vset.pattern.permute.xlu0 %v344
        %347 = vperm.xlu0 %346, %v342
        %v348 = vpop.permute.xlu0 %347
        %v349 = vlaneseq
        %v350 = vshrl.u32 %v349, 7
        %v351 = vadd.s32 %v350, 8
        %352 = vset.pattern.permute.xlu0 %v351
        %353 = vperm.xlu0 %352, %v342
        %v354 = vpop.permute.xlu0 %353
        %v355 = vperm.slane %v209, 3
        %v356 = vlaneseq
        %v357 = vshrl.u32 %v356, 7
        %359 = vset.pattern.permute.xlu0 %v357
        %360 = vperm.xlu0 %359, %v355
        %v361 = vpop.permute.xlu0 %360
        %v362 = vlaneseq
        %v363 = vshrl.u32 %v362, 7
        %v364 = vadd.s32 %v363, 8
        %365 = vset.pattern.permute.xlu0 %v364
        %366 = vperm.xlu0 %365, %v355
        %v367 = vpop.permute.xlu0 %366
        %v368 = vperm.slane %v209, 4
        %v369 = vlaneseq
        %v370 = vshrl.u32 %v369, 7
        %372 = vset.pattern.permute.xlu0 %v370
        %373 = vperm.xlu0 %372, %v368
        %v374 = vpop.permute.xlu0 %373
        %v375 = vlaneseq
        %v376 = vshrl.u32 %v375, 7
        %v377 = vadd.s32 %v376, 8
        %378 = vset.pattern.permute.xlu0 %v377
        %379 = vperm.xlu0 %378, %v368
        %v380 = vpop.permute.xlu0 %379
        %v383 = vrot.slane %v210, 1
        %v384 = vrot.slane %v210, 2
        %v385 = vrot.slane %v210, 3
        %v386 = vrot.slane %v210, 4
        %v387 = vrot.slane %v210, 5
        %v388 = vrot.slane %v210, 6
        %v389 = vrot.slane %v210, 7
        %v390 = vrot.slane %v211, 1
        %v391 = vrot.slane %v211, 2
        %v392 = vrot.slane %v211, 3
        %v393 = vrot.slane %v211, 4
        %v394 = vperm.slane %v210, 0
        %v395 = vperm.slane %v383, 0
        %v396 = vperm.slane %v384, 0
        %v397 = vperm.slane %v385, 0
        %v398 = vperm.slane %v386, 0
        %v399 = vperm.slane %v387, 0
        %v400 = vperm.slane %v388, 0
        %v401 = vperm.slane %v389, 0
        %v402 = vperm.slane %v211, 0
        %v403 = vperm.slane %v390, 0
        %v404 = vperm.slane %v391, 0
        %v405 = vperm.slane %v392, 0
        %v406 = vperm.slane %v393, 0
        %v420 = vadd.f32 %v218, %v394
        %v421 = vadd.f32 %v224, %v394
        %v422 = vadd.f32 %v231, %v395
        %v423 = vadd.f32 %v237, %v395
        %v424 = vadd.f32 %v244, %v396
        %v425 = vadd.f32 %v250, %v396
        %v426 = vadd.f32 %v257, %v397
        %v427 = vadd.f32 %v263, %v397
        %v428 = vadd.f32 %v270, %v398
        %v429 = vadd.f32 %v276, %v398
        %v430 = vadd.f32 %v283, %v399
        %v431 = vadd.f32 %v289, %v399
        %v432 = vadd.f32 %v296, %v400
        %v433 = vadd.f32 %v302, %v400
        %v434 = vadd.f32 %v309, %v401
        %v435 = vadd.f32 %v315, %v401
        %v436 = vadd.f32 %v322, %v402
        %v437 = vadd.f32 %v328, %v402
        %v438 = vadd.f32 %v335, %v403
        %v439 = vadd.f32 %v341, %v403
        %v440 = vadd.f32 %v348, %v404
        %v441 = vadd.f32 %v354, %v404
        %v442 = vadd.f32 %v361, %v405
        %v443 = vadd.f32 %v367, %v405
        %v444 = vadd.f32 %v374, %v406
        %v445 = vadd.f32 %v380, %v406
        %v446 = vpack.c.bf16 %v420, %v420
        %v447 = vpack.c.bf16 %v421, %v421
        %v448 = vpack.c.bf16 %v422, %v422
        %v449 = vpack.c.bf16 %v423, %v423
        %v450 = vpack.c.bf16 %v424, %v424
        %v451 = vpack.c.bf16 %v425, %v425
        %v452 = vpack.c.bf16 %v426, %v426
        %v453 = vpack.c.bf16 %v427, %v427
        %v454 = vpack.c.bf16 %v428, %v428
        %v455 = vpack.c.bf16 %v429, %v429
        %v456 = vpack.c.bf16 %v430, %v430
        %v457 = vpack.c.bf16 %v431, %v431
        %v458 = vpack.c.bf16 %v432, %v432
        %v459 = vpack.c.bf16 %v433, %v433
        %v460 = vpack.c.bf16 %v434, %v434
        %v461 = vpack.c.bf16 %v435, %v435
        %v462 = vpack.c.bf16 %v436, %v436
        %v463 = vpack.c.bf16 %v437, %v437
        %v464 = vpack.c.bf16 %v438, %v438
        %v465 = vpack.c.bf16 %v439, %v439
        %v466 = vpack.c.bf16 %v440, %v440
        %v467 = vpack.c.bf16 %v441, %v441
        %v468 = vpack.c.bf16 %v442, %v442
        %v469 = vpack.c.bf16 %v443, %v443
        %v470 = vpack.c.bf16 %v444, %v444
        %v471 = vpack.c.bf16 %v445, %v445
        %vm472 = vcmask 125952
        %473 = vst.msk [vmem:[%s190] sm:$0xf] %vm472, %v446
        %474 = vst.msk [vmem:[%s190 + $0x4] sm:$0xf] %vm472, %v447
        %475 = vst.msk [vmem:[%s190 + $0x8] sm:$0xf] %vm472, %v448
        %476 = vst.msk [vmem:[%s190 + $0xc] sm:$0xf] %vm472, %v449
        %477 = vst.msk [vmem:[%s190 + $0x10] sm:$0xf] %vm472, %v450
        %478 = vst.msk [vmem:[%s190 + $0x14] sm:$0xf] %vm472, %v451
        %479 = vst.msk [vmem:[%s190 + $0x18] sm:$0xf] %vm472, %v452
        %480 = vst.msk [vmem:[%s190 + $0x1c] sm:$0xf] %vm472, %v453
        %481 = vst.msk [vmem:[%s190 + $0x20] sm:$0xf] %vm472, %v454
        %482 = vst.msk [vmem:[%s190 + $0x24] sm:$0xf] %vm472, %v455
        %483 = vst.msk [vmem:[%s190 + $0x28] sm:$0xf] %vm472, %v456
        %484 = vst.msk [vmem:[%s190 + $0x2c] sm:$0xf] %vm472, %v457
        %485 = vst.msk [vmem:[%s190 + $0x30] sm:$0xf] %vm472, %v458
        %486 = vst.msk [vmem:[%s190 + $0x34] sm:$0xf] %vm472, %v459
        %487 = vst.msk [vmem:[%s190 + $0x38] sm:$0xf] %vm472, %v460
        %488 = vst.msk [vmem:[%s190 + $0x3c] sm:$0xf] %vm472, %v461
        %489 = vst.msk [vmem:[%s190 + $0x40] sm:$0xf] %vm472, %v462
        %490 = vst.msk [vmem:[%s190 + $0x44] sm:$0xf] %vm472, %v463
        %491 = vst.msk [vmem:[%s190 + $0x48] sm:$0xf] %vm472, %v464
        %492 = vst.msk [vmem:[%s190 + $0x4c] sm:$0xf] %vm472, %v465
        %493 = vst.msk [vmem:[%s190 + $0x50] sm:$0xf] %vm472, %v466
        %494 = vst.msk [vmem:[%s190 + $0x54] sm:$0xf] %vm472, %v467
        %495 = vst.msk [vmem:[%s190 + $0x58] sm:$0xf] %vm472, %v468
        %496 = vst.msk [vmem:[%s190 + $0x5c] sm:$0xf] %vm472, %v469
        %497 = vst.msk [vmem:[%s190 + $0x60] sm:$0xf] %vm472, %v470
        %498 = vst.msk [vmem:[%s190 + $0x64] sm:$0xf] %vm472, %v471
        %s499 = sand.u32 %s103, 1
        %s500 = scalar_lea.sflag [#allocation3], %s499
        %s501 = sand.u32 %s103, 1
        %s502 = smul.addr %s501, 104
        %s503 = scalar_lea.vmem [#allocation2], %s502
        // Predicated region
        $region29: #{unirel_forward.1} parent=27 // pred_check
          %p504 = pneg %p113
        $region30: #{unirel_forward.1} parent=27 // pred_check_branch
          %506 = sbr.rel (%p504) target = $region32
        $region31: #{unirel_forward.1} parent=27 // pred_region
          %s507 = smul.u32 2, %s22
          %509 = vsyncadd %s500, 0
          %s510 = sadd.s32 %s23, %s507
          %s511 = smul.addr %s21, 26
          %s512 = sadd.s32 %s510, %s511
          %s513 = smul.addr %s512, 4
          %s514 = scalar_lea.hbm %s2, %s513
          %s515 = sshll.u32 %s503, 4
          %s516 = int_to_ptr.vmem [resolvable:$true] %s515
          %s517 = sshll.u32 %s514, 4
          %s518 = int_to_ptr.hbm [resolvable:$true] %s517
          %523 = dma.vmem_to_hbm [thread:$0]  %s516, 1664, %s518, %s500, 64, 64, 4
        $region32: #{unirel_forward.1} parent=27 // pred_fallthru
          _
      $region28: #{unirel_forward.1} parent=5 // pred_fallthru
        _
      %p524 = scmp.le.s32.totalorder 2, %s11
      // Predicated region
      $region33: #{unirel_forward.1} parent=5 // pred_check
        %p525 = pneg %p524
      $region34: #{unirel_forward.1} parent=5 // pred_check_branch
        %527 = sbr.rel (%p525) target = $region36
      $region35: #{unirel_forward.1} parent=5 // pred_region
        %s528 = ssub.s32 %s11, 2
        // Predicated region
        $region37: #{unirel_forward.1} parent=35 // pred_check
          %p529 = pneg %p119
        $region38: #{unirel_forward.1} parent=35 // pred_check_branch
          %531 = sbr.rel (%p529) target = $region40
        $region39: #{unirel_forward.1} parent=35 // pred_region
          %s532 = sand.u32 %s104, 1
          %s533 = scalar_lea.sflag [#allocation3], %s532
          %s534 = sand.u32 %s104, 1
          %s535 = smul.addr %s534, 104
          %s536 = scalar_lea.vmem [#allocation2], %s535
          %538 = dma.done %s533, 1664
        $region40: #{unirel_forward.1} parent=35 // pred_fallthru
          _
      $region36: #{unirel_forward.1} parent=5 // pred_fallthru
        _
    $region6: #{unirel_forward.1} parent=1 // loop_footer
      %s15 = sadd.s32 1, %s11
    $region7: #{unirel_forward.1} parent=1 // loop_footer_branch
      %10 = sbr.rel target = $region3
    $region8: #{unirel_forward.1} parent=1 // loop_exit
      _
    %539 = vsyncpa [#allocation3], 1
    %s540 = scalar_lea.sflag [#allocation3], 1
    %541 = vsyncpa %s540, 1

</llo_original>
